<compile_context>
chip_gen: v7x
topology: tpu7x:2x2x1
jax: 0.10.0
libtpu: 0.0.40
codegen_flags: <defaults>
</compile_context>

<pallas_src>
import jax
import jax.numpy as jnp
from jax.experimental import pallas as pl
from jax.experimental.pallas import tpu as pltpu


def _hat_kernel(x_ref, o_ref):
    x = x_ref[...]
    zero = jnp.zeros_like(x)
    # Exact PyTorch where-chain semantics (NaN -> 0, -0.0 -> +0.0).
    y = jnp.where((x > 0) & (x < 1), x, zero)
    y = jnp.where((x >= 1) & (x < 2), 2 - x, y)
    o_ref[...] = y


def _min_sublanes(dtype) -> int:
    # Sub-32-bit dtypes pack rows along sublanes; keep row tiles aligned.
    return {4: 8, 2: 16, 1: 32}.get(jnp.dtype(dtype).itemsize, 8)


_LANE_CANDIDATES = (4096, 2048, 1024, 512, 256, 128)
_TARGET_TILE_BYTES = 4 * 1024 * 1024   # per buffer; in+out double-buffered = 16 MiB
_VMEM_LIMIT_BYTES = 32 * 1024 * 1024   # raise v5e's 16 MiB default; <= v7x 64 MiB phys
_MIN_GRID_STEPS = 8                    # keep both v7x TensorCores busy


def _choose_2d_layout(n: int, min_sub: int):
    """Pick a lane-dense (W, rows) factorization of n, or None if ragged."""
    # Prefer widths that also give sublane-aligned row counts.
    for w in _LANE_CANDIDATES:
        if n % w == 0 and (n // w) % min_sub == 0:
            return w, n // w
    # Any exact width (partial final block handles unaligned row counts).
    for w in _LANE_CANDIDATES:
        if n % w == 0:
            return w, n // w
    return None


def hat_pallas(x: jax.Array, *, inplace: bool = False) -> jax.Array:
    """Elementwise hat function computed in a Pallas TPU kernel."""
    orig_shape = x.shape
    dtype = x.dtype
    n = x.size
    if n == 0:
        return x

    itemsize = jnp.dtype(dtype).itemsize
    min_sub = _min_sublanes(dtype)

    compiler_params = pltpu.CompilerParams(
        dimension_semantics=("parallel",),
        vmem_limit_bytes=_VMEM_LIMIT_BYTES,
    )
    cost = pl.CostEstimate(
        flops=5 * n, transcendentals=0, bytes_accessed=2 * n * itemsize
    )
    alias = {0: 0} if inplace else {}

    layout = _choose_2d_layout(n, min_sub)
    if layout is not None:
        # ---- common case: lane-dense 2D slab, no padding anywhere ----
        w, rows = layout
        x2d = x.reshape(rows, w)

        block_rows = (_TARGET_TILE_BYTES // (w * itemsize)) // min_sub * min_sub
        block_rows = max(min_sub, block_rows)
        # Cap the block so the grid has ~>= _MIN_GRID_STEPS steps.
        cap = pl.cdiv(pl.cdiv(rows, _MIN_GRID_STEPS), min_sub) * min_sub
        block_rows = min(block_rows, max(min_sub, cap))
        if block_rows >= rows:
            block_rows = rows  # single full block (always layout-legal)
        grid = (pl.cdiv(rows, block_rows),)

        out = pl.pallas_call(
            _hat_kernel,
            out_shape=jax.ShapeDtypeStruct((rows, w), dtype),
            grid_spec=pltpu.PrefetchScalarGridSpec(
                num_scalar_prefetch=0,
                grid=grid,
                in_specs=[pl.BlockSpec((block_rows, w), lambda i: (i, 0))],
                out_specs=pl.BlockSpec((block_rows, w), lambda i: (i, 0)),
            ),
            compiler_params=compiler_params,
            cost_estimate=cost,
            input_output_aliases=alias,
        )(x2d)
        return out.reshape(orig_shape)

    # ---- ragged fallback: 1D lane-aligned blocks, masked partial final block
    # (no jnp.pad / post-slice -> no extra HBM round trips) ----
    flat = x.reshape(-1)
    block_n = max(1024, (512 * 1024 // itemsize) // 1024 * 1024)
    if block_n >= n:
        block_n = n  # single full block equals the array dim -> legal
    grid = (pl.cdiv(n, block_n),)

    out = pl.pallas_call(
        _hat_kernel,
        out_shape=jax.ShapeDtypeStruct((n,), dtype),
        grid_spec=pltpu.PrefetchScalarGridSpec(
            num_scalar_prefetch=0,
            grid=grid,
            in_specs=[pl.BlockSpec((block_n,), lambda i: (i,))],
            out_specs=pl.BlockSpec((block_n,), lambda i: (i,)),
        ),
        compiler_params=compiler_params,
        cost_estimate=cost,
        input_output_aliases=alias,
    )(flat)
    return out.reshape(orig_shape)


def hat_reference(x: jax.Array) -> jax.Array:
    """Pure-JAX reference matching the PyTorch semantics."""
    y = jnp.where((x > 0) & (x < 1), x, jnp.zeros_like(x))
    y = jnp.where((x >= 1) & (x < 2), 2 - x, y)
    return y


if __name__ == "__main__":
    key = jax.random.PRNGKey(0)
    # Small NCHW input; values spread over [-1, 3] to exercise all branches.
    x = jax.random.uniform(
        key, (2, 4, 16, 16), dtype=jnp.float32, minval=-1.0, maxval=3.0
    )

    y = jax.block_until_ready(hat_pallas(x))
    y_ref = hat_reference(x)
    assert y.shape == x.shape
    assert y.dtype == x.dtype
    assert jnp.allclose(y, y_ref, atol=1e-6), "mismatch vs reference"

    # Boundary values, NaN fidelity, and the ragged (non-divisible) 1D path.
    xb = jnp.array(
        [-0.5, 0.0, 0.5, 1.0, 1.5, 2.0, 2.5, float("nan"), 3.0],
        dtype=jnp.float32,
    )
    yb = jax.block_until_ready(hat_pallas(xb))
    assert jnp.allclose(yb, hat_reference(xb), atol=1e-6), "boundary mismatch"

    # Aliased (in-place) variant under jit with input donation.
    x2 = jax.random.uniform(
        jax.random.PRNGKey(1), (8, 128), dtype=jnp.float32, minval=-1.0, maxval=3.0
    )
    y2_ref = hat_reference(x2)
    hat_inplace = jax.jit(lambda a: hat_pallas(a, inplace=True), donate_argnums=0)
    y2 = jax.block_until_ready(hat_inplace(x2))
    assert jnp.allclose(y2, y2_ref, atol=1e-6), "inplace mismatch"

    print("KERNEL_OK")
</pallas_src>

<mosaic_0001>
module attributes {stable_mosaic.version = 11 : i64} {
  func.func @_hat_kernel(%arg0: i32, %arg1: memref<8x256xf32, #tpu.memory_space<vmem>>, %arg2: memref<8x256xf32, #tpu.memory_space<vmem>>) attributes {dimension_semantics = [#tpu.dimension_semantics<parallel>], iteration_bounds = array<i64: 1>, scalar_prefetch = 0 : i64, scratch_operands = 0 : i64, tpu.core_type = #tpu.core_type<tc>, window_params = [{transform_indices = @transform_0, window_bounds = array<i64: 8, 256>}, {transform_indices = @transform_1, window_bounds = array<i64: 8, 256>}]} {
    %c0 = arith.constant 0 : index
    %c0_0 = arith.constant 0 : index
    %0 = vector.load %arg1[%c0, %c0_0] : memref<8x256xf32, #tpu.memory_space<vmem>>, vector<8x256xf32>
    %cst = arith.constant 0.000000e+00 : f32
    %1 = vector.broadcast %cst : f32 to vector<8x256xf32>
    %cst_1 = arith.constant 0.000000e+00 : f32
    %2 = vector.broadcast %cst_1 : f32 to vector<8x256xf32>
    %3 = arith.cmpf ogt, %0, %2 : vector<8x256xf32>
    %cst_2 = arith.constant 1.000000e+00 : f32
    %4 = vector.broadcast %cst_2 : f32 to vector<8x256xf32>
    %5 = arith.cmpf olt, %0, %4 : vector<8x256xf32>
    %6 = arith.andi %3, %5 : vector<8x256xi1>
    %7 = arith.select %6, %0, %1 : vector<8x256xi1>, vector<8x256xf32>
    %cst_3 = arith.constant 1.000000e+00 : f32
    %8 = vector.broadcast %cst_3 : f32 to vector<8x256xf32>
    %9 = arith.cmpf oge, %0, %8 : vector<8x256xf32>
    %cst_4 = arith.constant 2.000000e+00 : f32
    %10 = vector.broadcast %cst_4 : f32 to vector<8x256xf32>
    %11 = arith.cmpf olt, %0, %10 : vector<8x256xf32>
    %12 = arith.andi %9, %11 : vector<8x256xi1>
    %cst_5 = arith.constant 2.000000e+00 : f32
    %13 = vector.broadcast %cst_5 : f32 to vector<8x256xf32>
    %14 = arith.subf %13, %0 : vector<8x256xf32>
    %15 = arith.select %12, %14, %7 : vector<8x256xi1>, vector<8x256xf32>
    %c0_6 = arith.constant 0 : index
    %c0_7 = arith.constant 0 : index
    %16 = vector.load %arg2[%c0_6, %c0_7] : memref<8x256xf32, #tpu.memory_space<vmem>>, vector<8x256xf32>
    tpu.vector_store %arg2[%c0_6, %c0_7], %15 {strides = array<i32>} : memref<8x256xf32, #tpu.memory_space<vmem>>, vector<8x256xf32>,
    return
  }
  func.func @transform_0(%arg0: i32) -> (i32, i32) {
    %c0_i32 = arith.constant 0 : i32
    %c0_i32_0 = arith.constant 0 : i32
    return %arg0, %c0_i32 : i32, i32
  }
  func.func @transform_1(%arg0: i32) -> (i32, i32) {
    %c0_i32 = arith.constant 0 : i32
    %c0_i32_0 = arith.constant 0 : i32
    return %arg0, %c0_i32 : i32, i32
  }
}

</mosaic_0001>

<llo_original>
// kernel: tpu_custom_call.1
$region0: #{tpu_custom_call.1}
  #allocation0 [shape = 'u32[]', space=smem, size = 0x4, offset = 0x4, fixed_abs, tag = 'smem constant byte address 0x4 - core index']
  #allocation1 [shape = 'u32[144,128]{1,0:T(1,128)}', space=vmem, size = 0x12000, scoped, tag = 'internal scratch']
  %s0 = inlined_call_operand.hbm [shape: f32[8,256], index: 0, kind: input, shape index: {}]
  %s1 = inlined_call_operand.hbm [shape: f32[8,256], index: 1, kind: output, shape index: {}]
  %s2 = sld [smem:[#allocation0]]
  $region18: #{tpu_custom_call.1} parent=0
    _
  %s4 = ssub.s32 1, %s2
  %s5 = scalar_select 0, %s4, %s2
  $region1: #{tpu_custom_call.1} parent=0
    #allocation2 [shape = 'u8[8192]{0}', space=vmem, size = 0x2000, scoped, tag = 'input window, operand 0, single buffered']
    #allocation3 [shape = 's32[1]{0}', space=sflag, size = 0x4, scoped, tag = 'scoped memory for tpu_custom_call.1']
    #allocation4 [shape = 's32[1]{0}', space=sflag, size = 0x4, scoped, tag = 'scoped memory for tpu_custom_call.1']
    #allocation5 [shape = 'u8[8192]{0}', space=vmem, size = 0x2000, scoped, tag = 'output window, operand 0, single buffered']
    %6 = vsyncpa [#allocation3], 0
    %7 = vsyncpa [#allocation4], 0
    // Predicated region
    $region2: #{tpu_custom_call.1} parent=1 // pred_check
      _
    $region3: #{tpu_custom_call.1} parent=1 // pred_check_branch
      %9 = sbr.rel (0) target = $region5
    $region4: #{tpu_custom_call.1} parent=1 // pred_region
      %s11 = ssub.s32 256, 256
      %12 = vsyncadd [#allocation3], %s11
      %s14 = sshll.u32 [#allocation2], 4
      %s15 = int_to_ptr.vmem [resolvable:$true] %s14
      %17 = dma.hbm_to_vmem [thread:$0]  %s0, 256, %s15, [#allocation3]
    $region5: #{tpu_custom_call.1} parent=1 // pred_fallthru
      _
    // Predicated region
    $region6: #{tpu_custom_call.1} parent=1 // pred_check
      _
    $region7: #{tpu_custom_call.1} parent=1 // pred_check_branch
      %19 = sbr.rel (0) target = $region9
    $region8: #{tpu_custom_call.1} parent=1 // pred_region
      %20 = dma.done [#allocation3], 256
    $region9: #{tpu_custom_call.1} parent=1 // pred_fallthru
      _
    %v21 = vld [vmem:[#allocation2] sm:$0xff]
    %v22 = vld [vmem:[#allocation2 + $0x8] sm:$0xff]
    %vm23 = vcmp.gt.f32.partialorder %v21, 0.0
    %vm24 = vcmp.gt.f32.partialorder %v22, 0.0
    %vm25 = vcmp.lt.f32.partialorder %v21, 1.0
    %vm26 = vcmp.lt.f32.partialorder %v22, 1.0
    %vm27 = vmand %vm23, %vm25
    %vm28 = vmand %vm24, %vm26
    %v29 = vsel %vm27, %v21, 0.0
    %v30 = vsel %vm28, %v22, 0.0
    %vm31 = vcmp.ge.f32.partialorder %v21, 1.0
    %vm32 = vcmp.ge.f32.partialorder %v22, 1.0
    %vm33 = vcmp.lt.f32.partialorder %v21, 2.0
    %vm34 = vcmp.lt.f32.partialorder %v22, 2.0
    %vm35 = vmand %vm31, %vm33
    %vm36 = vmand %vm32, %vm34
    %v37 = vsub.f32 2.0, %v21
    %v38 = vsub.f32 2.0, %v22
    %v39 = vsel %vm35, %v37, %v29
    %v40 = vsel %vm36, %v38, %v30
    %41 = vst [vmem:[#allocation5] sm:$0xff] %v39
    %42 = vst [vmem:[#allocation5 + $0x8] sm:$0xff] %v40
    // Predicated region
    $region10: #{tpu_custom_call.1} parent=1 // pred_check
      _
    $region11: #{tpu_custom_call.1} parent=1 // pred_check_branch
      %44 = sbr.rel (0) target = $region13
    $region12: #{tpu_custom_call.1} parent=1 // pred_region
      %s46 = ssub.s32 256, 256
      %47 = vsyncadd [#allocation4], %s46
      %s49 = sshll.u32 [#allocation5], 4
      %s50 = int_to_ptr.vmem [resolvable:$true] %s49
      %52 = dma.vmem_to_hbm [thread:$0]  %s50, 256, %s1, [#allocation4]
    $region13: #{tpu_custom_call.1} parent=1 // pred_fallthru
      _
    // Predicated region
    $region14: #{tpu_custom_call.1} parent=1 // pred_check
      _
    $region15: #{tpu_custom_call.1} parent=1 // pred_check_branch
      %54 = sbr.rel (0) target = $region17
    $region16: #{tpu_custom_call.1} parent=1 // pred_region
      %55 = dma.done [#allocation4], 256
    $region17: #{tpu_custom_call.1} parent=1 // pred_fallthru
      _
    %56 = vsyncpa [#allocation3], 1
    %57 = vsyncpa [#allocation4], 1

</llo_original>
